<compile_context>
chip_gen: v6e
topology: v6e:2x2x1
jax: 0.10.0
libtpu: 0.0.40
codegen_flags: <defaults>
</compile_context>

<pallas_src>
import functools

import jax
import jax.numpy as jnp
from jax.experimental import pallas as pl
from jax.experimental.pallas import tpu as pltpu

EPS = 1e-5


def conv_bn_act_kernel(x_ref, wdw_ref, g1_ref, b1_ref, wpw_ref, g2_ref, b2_ref,
                       o_ref, *, L):
    x = x_ref[...]                      # (C_in, N*L) lane-dense slab
    wdw = wdw_ref[...]                  # (C_in, K)   depthwise taps
    C_in, NL = x.shape
    K = wdw.shape[1]
    pad = (K - 1) // 2
    inv_nl = 1.0 / NL                   # BN reduces over N and L == all lanes

    # within-sample position of every lane column (samples are L-contiguous)
    l_idx = jax.lax.broadcasted_iota(jnp.int32, (C_in, NL), 1) % L

    # ---- depthwise conv (groups = C_in), stride 1 ----
    # start from the centre tap: no shift, no mask, no zeros init
    acc = wdw[:, pad:pad + 1] * x
    for k in range(K):                  # K is tiny and static -> unrolled
        d = k - pad
        if d == 0:
            continue
        shifted = pltpu.roll(x, shift=(-d) % NL, axis=1)   # XLU rotate (cheap)
        valid = (l_idx + d >= 0) & (l_idx + d < L)         # zero the halo taps
        acc = acc + wdw[:, k:k + 1] * jnp.where(valid, shifted, 0.0)
    # depthwise bias intentionally omitted: cancelled exactly by BN1 below.

    # ---- BatchNorm1d(C_in), training stats, single pass, folded affine ----
    s1 = jnp.sum(acc, axis=1, keepdims=True)               # (C_in, 1)
    q1 = jnp.sum(acc * acc, axis=1, keepdims=True)
    m1 = s1 * inv_nl
    v1 = q1 * inv_nl - m1 * m1
    sc1 = g1_ref[...] * jax.lax.rsqrt(v1 + EPS)
    sh1 = b1_ref[...] - m1 * sc1
    h = jnp.maximum(acc * sc1 + sh1, 0.0)                  # ReLU

    # ---- pointwise 1x1 conv: one lane-dense 2-D matmul on the MXU ----
    y = jnp.dot(wpw_ref[...], h, preferred_element_type=jnp.float32)  # (C_out, NL)
    # pointwise bias intentionally omitted: cancelled exactly by BN2 below.

    # ---- BatchNorm1d(C_out) + final ReLU ----
    s2 = jnp.sum(y, axis=1, keepdims=True)
    q2 = jnp.sum(y * y, axis=1, keepdims=True)
    m2 = s2 * inv_nl
    v2 = q2 * inv_nl - m2 * m2
    sc2 = g2_ref[...] * jax.lax.rsqrt(v2 + EPS)
    sh2 = b2_ref[...] - m2 * sc2
    o_ref[...] = jnp.maximum(y * sc2 + sh2, 0.0)


def conv_bn_activation(x, w_dw, b_dw, g1, beta1, w_pw, b_pw, g2, beta2):
    """x: (N, C_in, L) float32 -> (N, C_out, L) float32.

    b_dw / b_pw are accepted for API parity with the PyTorch module but are not
    sent to the kernel: with training-mode BatchNorm directly after each conv
    they cancel exactly (mean subtraction removes them, variance is unchanged).
    """
    N, C_in, L = x.shape
    C_out, K = w_pw.shape[0], w_dw.shape[1]
    # PyTorch Conv1d with padding=(K-1)//2 only preserves length for odd K.
    assert K % 2 == 1, "kernel_size must be odd to keep output length == L"
    del b_dw, b_pw

    # Layout plumbing: channels -> sublanes, flattened (N, L) -> lanes.
    # Choosing N*L as a multiple of 128 gives fully unmasked (lane-dense) stores.
    x2 = jnp.transpose(x, (1, 0, 2)).reshape(C_in, N * L)

    args = (
        x2,                              # (C_in, N*L)
        w_dw,                            # (C_in, K)
        g1.reshape(C_in, 1),
        beta1.reshape(C_in, 1),
        w_pw,                            # (C_out, C_in)
        g2.reshape(C_out, 1),
        beta2.reshape(C_out, 1),
    )
    vmem = pl.BlockSpec(memory_space=pltpu.MemorySpace.VMEM)
    out2 = pl.pallas_call(
        functools.partial(conv_bn_act_kernel, L=L),
        out_shape=jax.ShapeDtypeStruct((C_out, N * L), jnp.float32),
        in_specs=[vmem] * len(args),
        out_specs=vmem,
        compiler_params=pltpu.CompilerParams(vmem_limit_bytes=32 * 1024 * 1024),
    )(*args)
    # TODO(synk): for large N*L, tile the lane axis with a grid + two-pass BN
    # (partial sum/sumsq accumulation on an "arbitrary" axis, normalize pass
    # second) and mark the tile axis "parallel" for megacore sharding; also pad
    # channels to a multiple of 8 sublanes once C_in/C_out grow.
    return jnp.transpose(out2.reshape(C_out, N, L), (1, 0, 2))


def _reference(x, w_dw, b_dw, g1, beta1, w_pw, b_pw, g2, beta2):
    """Pure-JAX reference mirroring the PyTorch forward (training-mode BN)."""
    N, C_in, L = x.shape
    K = w_dw.shape[1]
    pad = (K - 1) // 2
    xp = jnp.pad(x, ((0, 0), (0, 0), (pad, pad)))
    acc = sum(w_dw[None, :, k:k + 1] * xp[:, :, k:k + L] for k in range(K))
    acc = acc + b_dw[None, :, None]

    def bn(v, g, b):
        m = jnp.mean(v, axis=(0, 2), keepdims=True)
        s = jnp.mean((v - m) ** 2, axis=(0, 2), keepdims=True)
        return (v - m) / jnp.sqrt(s + EPS) * g[None, :, None] + b[None, :, None]

    h = jnp.maximum(bn(acc, g1, beta1), 0.0)
    y = jnp.einsum("ncl,oc->nol", h, w_pw) + b_pw[None, :, None]
    return jnp.maximum(bn(y, g2, beta2), 0.0)


if __name__ == "__main__":
    # N*L = 128 -> one full lane vector: unmasked stores and a single 2-D matmul.
    N, C_in, C_out, L, K = 2, 4, 8, 64, 3

    key = jax.random.PRNGKey(0)
    ks = jax.random.split(key, 6)
    x = jax.random.normal(ks[0], (N, C_in, L), jnp.float32)
    w_dw = jax.random.normal(ks[1], (C_in, K), jnp.float32) * 0.3
    b_dw = jax.random.normal(ks[2], (C_in,), jnp.float32) * 0.1
    w_pw = jax.random.normal(ks[3], (C_out, C_in), jnp.float32) * 0.3
    b_pw = jax.random.normal(ks[4], (C_out,), jnp.float32) * 0.1
    # BatchNorm affine params: PyTorch default init (gamma=1, beta=0),
    # perturbed slightly so the affine path is actually exercised.
    g1 = jnp.ones((C_in,), jnp.float32) + 0.05
    beta1 = jnp.full((C_in,), 0.02, jnp.float32)
    g2 = jnp.ones((C_out,), jnp.float32) - 0.03
    beta2 = jnp.full((C_out,), -0.01, jnp.float32)

    out = conv_bn_activation(x, w_dw, b_dw, g1, beta1, w_pw, b_pw, g2, beta2)
    jax.block_until_ready(out)

    ref = _reference(x, w_dw, b_dw, g1, beta1, w_pw, b_pw, g2, beta2)
    assert out.shape == (N, C_out, L)
    assert jnp.allclose(out, ref, atol=1e-4, rtol=1e-4), "mismatch vs reference"

    print("KERNEL_OK")
</pallas_src>

<mosaic_0001>
module attributes {stable_mosaic.version = 11 : i64} {
  func.func @conv_bn_act_kernel(%arg0: memref<4x128xf32, #tpu.memory_space<vmem>>, %arg1: memref<4x3xf32, #tpu.memory_space<vmem>>, %arg2: memref<4x1xf32, #tpu.memory_space<vmem>>, %arg3: memref<4x1xf32, #tpu.memory_space<vmem>>, %arg4: memref<8x4xf32, #tpu.memory_space<vmem>>, %arg5: memref<8x1xf32, #tpu.memory_space<vmem>>, %arg6: memref<8x1xf32, #tpu.memory_space<vmem>>, %arg7: memref<8x128xf32, #tpu.memory_space<vmem>>) attributes {dimension_semantics = [], scalar_prefetch = 0 : i64, scratch_operands = 0 : i64, tpu.core_type = #tpu.core_type<tc>} {
    %c0 = arith.constant 0 : index
    %c0_0 = arith.constant 0 : index
    %0 = vector.load %arg0[%c0, %c0_0] : memref<4x128xf32, #tpu.memory_space<vmem>>, vector<4x128xf32>
    %c0_1 = arith.constant 0 : index
    %c0_2 = arith.constant 0 : index
    %1 = vector.load %arg1[%c0_1, %c0_2] : memref<4x3xf32, #tpu.memory_space<vmem>>, vector<4x3xf32>
    %2 = tpu.iota {dimensions = array<i32: 1>} : vector<4x128xi32>
    %c64_i32 = arith.constant 64 : i32
    %c0_i32 = arith.constant 0 : i32
    %3 = arith.cmpi eq, %c64_i32, %c0_i32 : i32
    %c1_i32 = arith.constant 1 : i32
    %4 = arith.select %3, %c1_i32, %c64_i32 : i32
    %5 = vector.broadcast %4 : i32 to vector<4x128xi32>
    %6 = arith.remsi %2, %5 : vector<4x128xi32>
    %c0_i32_3 = arith.constant 0 : i32
    %7 = vector.broadcast %c0_i32_3 : i32 to vector<4x128xi32>
    %8 = arith.cmpi ne, %6, %7 : vector<4x128xi32>
    %c0_i32_4 = arith.constant 0 : i32
    %9 = vector.broadcast %c0_i32_4 : i32 to vector<4x128xi32>
    %10 = arith.cmpi slt, %6, %9 : vector<4x128xi32>
    %c0_i32_5 = arith.constant 0 : i32
    %11 = arith.cmpi slt, %4, %c0_i32_5 : i32
    %12 = vector.broadcast %11 : i1 to vector<4x128xi1>
    %13 = vector.broadcast %12 : vector<4x128xi1> to vector<4x128xi1>
    %14 = arith.xori %10, %13 : vector<4x128xi1>
    %15 = arith.andi %14, %8 : vector<4x128xi1>
    %16 = vector.broadcast %4 : i32 to vector<4x128xi32>
    %17 = arith.addi %6, %16 : vector<4x128xi32>
    %18 = arith.select %15, %17, %6 : vector<4x128xi1>, vector<4x128xi32>
    %19 = vector.extract_strided_slice %1 {offsets = [0, 1], sizes = [4, 1], strides = [1, 1]} : vector<4x3xf32> to vector<4x1xf32>
    %20 = vector.broadcast %19 : vector<4x1xf32> to vector<4x128xf32>
    %21 = arith.mulf %20, %0 : vector<4x128xf32>
    %c1_i32_6 = arith.constant 1 : i32
    %22 = tpu.dynamic_rotate %0 by %c1_i32_6 dim 1 : vector<4x128xf32>, i32 -> vector<4x128xf32>
    %c-1_i32 = arith.constant -1 : i32
    %23 = vector.broadcast %c-1_i32 : i32 to vector<4x128xi32>
    %24 = arith.addi %18, %23 : vector<4x128xi32>
    %c0_i32_7 = arith.constant 0 : i32
    %25 = vector.broadcast %c0_i32_7 : i32 to vector<4x128xi32>
    %26 = arith.cmpi sge, %24, %25 : vector<4x128xi32>
    %c-1_i32_8 = arith.constant -1 : i32
    %27 = vector.broadcast %c-1_i32_8 : i32 to vector<4x128xi32>
    %28 = arith.addi %18, %27 : vector<4x128xi32>
    %c64_i32_9 = arith.constant 64 : i32
    %29 = vector.broadcast %c64_i32_9 : i32 to vector<4x128xi32>
    %30 = arith.cmpi slt, %28, %29 : vector<4x128xi32>
    %31 = arith.andi %26, %30 : vector<4x128xi1>
    %32 = vector.extract_strided_slice %1 {offsets = [0, 0], sizes = [4, 1], strides = [1, 1]} : vector<4x3xf32> to vector<4x1xf32>
    %cst = arith.constant 0.000000e+00 : f32
    %33 = vector.broadcast %cst : f32 to vector<4x128xf32>
    %34 = arith.select %31, %22, %33 : vector<4x128xi1>, vector<4x128xf32>
    %35 = vector.broadcast %32 : vector<4x1xf32> to vector<4x128xf32>
    %36 = arith.mulf %35, %34 : vector<4x128xf32>
    %37 = arith.addf %21, %36 : vector<4x128xf32>
    %c127_i32 = arith.constant 127 : i32
    %38 = tpu.dynamic_rotate %0 by %c127_i32 dim 1 : vector<4x128xf32>, i32 -> vector<4x128xf32>
    %c1_i32_10 = arith.constant 1 : i32
    %39 = vector.broadcast %c1_i32_10 : i32 to vector<4x128xi32>
    %40 = arith.addi %18, %39 : vector<4x128xi32>
    %c0_i32_11 = arith.constant 0 : i32
    %41 = vector.broadcast %c0_i32_11 : i32 to vector<4x128xi32>
    %42 = arith.cmpi sge, %40, %41 : vector<4x128xi32>
    %c1_i32_12 = arith.constant 1 : i32
    %43 = vector.broadcast %c1_i32_12 : i32 to vector<4x128xi32>
    %44 = arith.addi %18, %43 : vector<4x128xi32>
    %c64_i32_13 = arith.constant 64 : i32
    %45 = vector.broadcast %c64_i32_13 : i32 to vector<4x128xi32>
    %46 = arith.cmpi slt, %44, %45 : vector<4x128xi32>
    %47 = arith.andi %42, %46 : vector<4x128xi1>
    %48 = vector.extract_strided_slice %1 {offsets = [0, 2], sizes = [4, 1], strides = [1, 1]} : vector<4x3xf32> to vector<4x1xf32>
    %cst_14 = arith.constant 0.000000e+00 : f32
    %49 = vector.broadcast %cst_14 : f32 to vector<4x128xf32>
    %50 = arith.select %47, %38, %49 : vector<4x128xi1>, vector<4x128xf32>
    %51 = vector.broadcast %48 : vector<4x1xf32> to vector<4x128xf32>
    %52 = arith.mulf %51, %50 : vector<4x128xf32>
    %53 = arith.addf %37, %52 : vector<4x128xf32>
    %cst_15 = arith.constant dense<0.000000e+00> : vector<4xf32>
    %54 = vector.multi_reduction <add>, %53, %cst_15 [1] : vector<4x128xf32> to vector<4xf32>
    %55 = vector.shape_cast %54 : vector<4xf32> to vector<4x1xf32>
    %56 = arith.mulf %53, %53 : vector<4x128xf32>
    %cst_16 = arith.constant dense<0.000000e+00> : vector<4xf32>
    %57 = vector.multi_reduction <add>, %56, %cst_16 [1] : vector<4x128xf32> to vector<4xf32>
    %58 = vector.shape_cast %57 : vector<4xf32> to vector<4x1xf32>
    %cst_17 = arith.constant 7.812500e-03 : f32
    %59 = vector.broadcast %cst_17 : f32 to vector<4x1xf32>
    %60 = arith.mulf %55, %59 : vector<4x1xf32>
    %cst_18 = arith.constant 7.812500e-03 : f32
    %61 = vector.broadcast %cst_18 : f32 to vector<4x1xf32>
    %62 = arith.mulf %58, %61 : vector<4x1xf32>
    %63 = arith.mulf %60, %60 : vector<4x1xf32>
    %64 = arith.subf %62, %63 : vector<4x1xf32>
    %c0_19 = arith.constant 0 : index
    %c0_20 = arith.constant 0 : index
    %65 = vector.load %arg2[%c0_19, %c0_20] : memref<4x1xf32, #tpu.memory_space<vmem>>, vector<4x1xf32>
    %cst_21 = arith.constant 9.99999974E-6 : f32
    %66 = vector.broadcast %cst_21 : f32 to vector<4x1xf32>
    %67 = arith.addf %64, %66 : vector<4x1xf32>
    %68 = math.rsqrt %67 : vector<4x1xf32>
    %69 = arith.mulf %65, %68 : vector<4x1xf32>
    %c0_22 = arith.constant 0 : index
    %c0_23 = arith.constant 0 : index
    %70 = vector.load %arg3[%c0_22, %c0_23] : memref<4x1xf32, #tpu.memory_space<vmem>>, vector<4x1xf32>
    %71 = arith.mulf %60, %69 : vector<4x1xf32>
    %72 = arith.subf %70, %71 : vector<4x1xf32>
    %73 = vector.broadcast %69 : vector<4x1xf32> to vector<4x128xf32>
    %74 = arith.mulf %53, %73 : vector<4x128xf32>
    %75 = vector.broadcast %72 : vector<4x1xf32> to vector<4x128xf32>
    %76 = arith.addf %74, %75 : vector<4x128xf32>
    %cst_24 = arith.constant 0.000000e+00 : f32
    %77 = vector.broadcast %cst_24 : f32 to vector<4x128xf32>
    %78 = arith.maximumf %76, %77 : vector<4x128xf32>
    %c0_25 = arith.constant 0 : index
    %c0_26 = arith.constant 0 : index
    %79 = vector.load %arg4[%c0_25, %c0_26] : memref<8x4xf32, #tpu.memory_space<vmem>>, vector<8x4xf32>
    %cst_27 = arith.constant dense<0.000000e+00> : vector<8x128xf32>
    %80 = tpu.matmul %79, %78, %cst_27 {dimension_numbers = #tpu.dot_dimension_numbers<[1], [0], [0], [1], [0, 0, 1, 1], [], []>} : vector<8x4xf32>, vector<4x128xf32>, vector<8x128xf32> -> vector<8x128xf32>
    %cst_28 = arith.constant dense<0.000000e+00> : vector<8xf32>
    %81 = vector.multi_reduction <add>, %80, %cst_28 [1] : vector<8x128xf32> to vector<8xf32>
    %82 = vector.shape_cast %81 : vector<8xf32> to vector<8x1xf32>
    %83 = arith.mulf %80, %80 : vector<8x128xf32>
    %cst_29 = arith.constant dense<0.000000e+00> : vector<8xf32>
    %84 = vector.multi_reduction <add>, %83, %cst_29 [1] : vector<8x128xf32> to vector<8xf32>
    %85 = vector.shape_cast %84 : vector<8xf32> to vector<8x1xf32>
    %cst_30 = arith.constant 7.812500e-03 : f32
    %86 = vector.broadcast %cst_30 : f32 to vector<8x1xf32>
    %87 = arith.mulf %82, %86 : vector<8x1xf32>
    %cst_31 = arith.constant 7.812500e-03 : f32
    %88 = vector.broadcast %cst_31 : f32 to vector<8x1xf32>
    %89 = arith.mulf %85, %88 : vector<8x1xf32>
    %90 = arith.mulf %87, %87 : vector<8x1xf32>
    %91 = arith.subf %89, %90 : vector<8x1xf32>
    %c0_32 = arith.constant 0 : index
    %c0_33 = arith.constant 0 : index
    %92 = vector.load %arg5[%c0_32, %c0_33] : memref<8x1xf32, #tpu.memory_space<vmem>>, vector<8x1xf32>
    %cst_34 = arith.constant 9.99999974E-6 : f32
    %93 = vector.broadcast %cst_34 : f32 to vector<8x1xf32>
    %94 = arith.addf %91, %93 : vector<8x1xf32>
    %95 = math.rsqrt %94 : vector<8x1xf32>
    %96 = arith.mulf %92, %95 : vector<8x1xf32>
    %c0_35 = arith.constant 0 : index
    %c0_36 = arith.constant 0 : index
    %97 = vector.load %arg6[%c0_35, %c0_36] : memref<8x1xf32, #tpu.memory_space<vmem>>, vector<8x1xf32>
    %98 = arith.mulf %87, %96 : vector<8x1xf32>
    %99 = arith.subf %97, %98 : vector<8x1xf32>
    %100 = vector.broadcast %96 : vector<8x1xf32> to vector<8x128xf32>
    %101 = arith.mulf %80, %100 : vector<8x128xf32>
    %102 = vector.broadcast %99 : vector<8x1xf32> to vector<8x128xf32>
    %103 = arith.addf %101, %102 : vector<8x128xf32>
    %cst_37 = arith.constant 0.000000e+00 : f32
    %104 = vector.broadcast %cst_37 : f32 to vector<8x128xf32>
    %105 = arith.maximumf %103, %104 : vector<8x128xf32>
    %c0_38 = arith.constant 0 : index
    %c0_39 = arith.constant 0 : index
    %106 = vector.load %arg7[%c0_38, %c0_39] : memref<8x128xf32, #tpu.memory_space<vmem>>, vector<8x128xf32>
    tpu.vector_store %arg7[%c0_38, %c0_39], %105 {strides = array<i32>} : memref<8x128xf32, #tpu.memory_space<vmem>>, vector<8x128xf32>,
    return
  }
}

</mosaic_0001>

<llo_original>
// kernel: tpu_custom_call.1
$region0: #{tpu_custom_call.1}
  #allocation0 [shape = 'u32[]', space=smem, size = 0x4, offset = 0x4, fixed_abs, tag = 'smem constant byte address 0x4 - core index']
  #allocation1 [shape = 'u32[144,128]{1,0:T(1,128)}', space=vmem, size = 0x12000, scoped, tag = 'internal scratch']
  %s0 = inlined_call_operand.vmem [shape: f32[4,128], index: 0, kind: input, shape index: {}]
  %s1 = inlined_call_operand.vmem [shape: f32[4,3], index: 1, kind: input, shape index: {}]
  %s2 = inlined_call_operand.vmem [shape: f32[4,1], index: 2, kind: input, shape index: {}]
  %s3 = inlined_call_operand.vmem [shape: f32[4,1], index: 3, kind: input, shape index: {}]
  %s4 = inlined_call_operand.vmem [shape: f32[8,4], index: 4, kind: input, shape index: {}]
  %s5 = inlined_call_operand.vmem [shape: f32[8,1], index: 5, kind: input, shape index: {}]
  %s6 = inlined_call_operand.vmem [shape: f32[8,1], index: 6, kind: input, shape index: {}]
  %s7 = inlined_call_operand.hbm [shape: f32[8,128], index: 7, kind: output, shape index: {}]
  %s8 = sld [smem:[#allocation0]]
  $region38: #{tpu_custom_call.1} parent=0
    _
  %s10 = ssub.s32 1, %s8
  %s11 = scalar_select 0, %s10, %s8
  $region1: #{tpu_custom_call.1} parent=0
    #allocation2 [shape = 'u8[4096]{0}', space=vmem, size = 0x1000, scoped, tag = 'output window, operand 0, single buffered']
    #allocation3 [shape = 's32[1]{0}', space=sflag, size = 0x4, scoped, tag = 'scoped memory for tpu_custom_call.1']
    %12 = vsyncpa [#allocation3], 0
    // Predicated region
    $region2: #{tpu_custom_call.1} parent=1 // pred_check
      _
    $region3: #{tpu_custom_call.1} parent=1 // pred_check_branch
      %14 = sbr.rel (0) target = $region5
    $region4: #{tpu_custom_call.1} parent=1 // pred_region
      _
    $region5: #{tpu_custom_call.1} parent=1 // pred_fallthru
      _
    // Predicated region
    $region6: #{tpu_custom_call.1} parent=1 // pred_check
      _
    $region7: #{tpu_custom_call.1} parent=1 // pred_check_branch
      %16 = sbr.rel (0) target = $region9
    $region8: #{tpu_custom_call.1} parent=1 // pred_region
      _
    $region9: #{tpu_custom_call.1} parent=1 // pred_fallthru
      _
    // Predicated region
    $region10: #{tpu_custom_call.1} parent=1 // pred_check
      _
    $region11: #{tpu_custom_call.1} parent=1 // pred_check_branch
      %18 = sbr.rel (0) target = $region13
    $region12: #{tpu_custom_call.1} parent=1 // pred_region
      _
    $region13: #{tpu_custom_call.1} parent=1 // pred_fallthru
      _
    // Predicated region
    $region14: #{tpu_custom_call.1} parent=1 // pred_check
      _
    $region15: #{tpu_custom_call.1} parent=1 // pred_check_branch
      %20 = sbr.rel (0) target = $region17
    $region16: #{tpu_custom_call.1} parent=1 // pred_region
      _
    $region17: #{tpu_custom_call.1} parent=1 // pred_fallthru
      _
    // Predicated region
    $region18: #{tpu_custom_call.1} parent=1 // pred_check
      _
    $region19: #{tpu_custom_call.1} parent=1 // pred_check_branch
      %22 = sbr.rel (0) target = $region21
    $region20: #{tpu_custom_call.1} parent=1 // pred_region
      _
    $region21: #{tpu_custom_call.1} parent=1 // pred_fallthru
      _
    // Predicated region
    $region22: #{tpu_custom_call.1} parent=1 // pred_check
      _
    $region23: #{tpu_custom_call.1} parent=1 // pred_check_branch
      %24 = sbr.rel (0) target = $region25
    $region24: #{tpu_custom_call.1} parent=1 // pred_region
      _
    $region25: #{tpu_custom_call.1} parent=1 // pred_fallthru
      _
    // Predicated region
    $region26: #{tpu_custom_call.1} parent=1 // pred_check
      _
    $region27: #{tpu_custom_call.1} parent=1 // pred_check_branch
      %26 = sbr.rel (0) target = $region29
    $region28: #{tpu_custom_call.1} parent=1 // pred_region
      _
    $region29: #{tpu_custom_call.1} parent=1 // pred_fallthru
      _
    %v27 = vld [vmem:[%s0] sm:$0xf]
    %v28 = vld [vmem:[%s1] sm:$0xf]
    %v29 = vlaneseq
    %v30 = vand.u32 %v29, 127
    %vm31 = vcmp.lt.s32.totalorder %v30, 0
    %v32 = vsub.s32 0, %v30
    %v33 = vsel %vm31, %v32, %v30
    %v34 = vshrl.u32 %v33, 6
    %v35 = vand.u32 %v33, 63
    %v36 = vsub.s32 0, %v35
    %v37 = vsel %vm31, %v36, %v35
    %vm38 = vcmp.ne.s32.totalorder %v37, 0
    %vm39 = vcmp.lt.s32.totalorder %v37, 0
    %vm40 = vmand %vm39, %vm38
    %v41 = vadd.s32 %v37, 64
    %v42 = vsel %vm40, %v41, %v37
    %44 = vset.pattern.permute.xlu0 1
    %45 = vperm.xlu0 %44, %v28
    %v46 = vpop.permute.xlu0 %45
    %v48 = vmul.f32 %v46, %v27
    %49 = vrot.lane.b32.xlu0 %v27, 1
    %v50 = vpop.permute.xlu0 %49
    %v51 = vadd.s32 %v42, 4294967295
    %vm52 = vcmp.ge.s32.totalorder %v51, 0
    %vm53 = vcmp.lt.s32.totalorder %v51, 64
    %vm54 = vmand %vm52, %vm53
    %v55 = vsel %vm54, %v50, 0.0
    %56 = vset.pattern.permute.xlu0 0
    %57 = vperm.xlu0 %56, %v28
    %v58 = vpop.permute.xlu0 %57
    %v60 = vmul.f32 %v58, %v55
    %v61 = vadd.f32 %v48, %v60
    %62 = vrot.lane.b32.xlu0 %v27, 127
    %v63 = vpop.permute.xlu0 %62
    %v64 = vadd.s32 %v42, 1
    %vm65 = vcmp.ge.s32.totalorder %v64, 0
    %vm66 = vcmp.lt.s32.totalorder %v64, 64
    %vm67 = vmand %vm65, %vm66
    %v68 = vsel %vm67, %v63, 0.0
    %69 = vset.pattern.permute.xlu0 2
    %70 = vperm.xlu0 %69, %v28
    %v71 = vpop.permute.xlu0 %70
    %v73 = vmul.f32 %v71, %v68
    %v74 = vadd.f32 %v61, %v73
    %vm75 = vcmask 1043456
    %v76 = vsel %vm75, %v74, 0.0
    %77 = vadd.xlane.f32.xlu0 %v76
    %v78 = vpop.xlane.xlu0 %77
    %v79 = vmul.f32 %v74, %v74
    %v80 = vsel %vm75, %v79, 0.0
    %81 = vadd.xlane.f32.xlu0 %v80
    %v82 = vpop.xlane.xlu0 %81
    %v83 = vmul.f32 %v78, 0.0078125
    %v84 = vmul.f32 %v82, 0.0078125
    %v85 = vmul.f32 %v83, %v83
    %v86 = vsub.f32 %v84, %v85
    %v87 = vld [vmem:[%s2] sm:$0xf]
    %v88 = vadd.f32 %v86, 1e-05
    %v89 = vrsqrt.pop %v88
    %v90 = vmul.f32 %v87, %v89
    %v91 = vld [vmem:[%s3] sm:$0xf]
    %v92 = vmul.f32 %v83, %v90
    %v93 = vsub.f32 %v91, %v92
    %95 = vset.pattern.permute.xlu0 0
    %96 = vperm.xlu0 %95, %v90
    %v97 = vpop.permute.xlu0 %96
    %v99 = vmul.f32 %v74, %v97
    %101 = vset.pattern.permute.xlu0 0
    %102 = vperm.xlu0 %101, %v93
    %v103 = vpop.permute.xlu0 %102
    %v105 = vadd.f32 %v99, %v103
    %v106 = vmax.f32 %v105, 0.0
    %v107 = vld [vmem:[%s4] sm:$0xff]
    %vm108 = vcmask 31744
    %v110 = vsel %vm108, %v107, 0
    %v113 = vsel %vm75, %v106, 0
    %115 = vmatprep.subr.mxu0 0.0
    %116 = vmatpush1.msra.mxu0 0.0
    %117 = vmatprep.subr.mxu0 0.0
    %118 = vmatpush1.msra.mxu0 0.0
    %119 = vmatprep.subr.mxu0 0.0
    %120 = vmatpush1.msra.mxu0 0.0
    %121 = vmatprep.subr.mxu0 0.0
    %122 = vmatpush1.msra.mxu0 0.0
    %123 = vmatprep.subr.mxu0 0.0
    %124 = vmatpush1.msra.mxu0 0.0
    %125 = vmatprep.subr.mxu0 0.0
    %126 = vmatpush1.msra.mxu0 0.0
    %127 = vmatprep.subr.mxu0 0.0
    %128 = vmatpush1.msra.mxu0 0.0
    %129 = vmatprep.subr.mxu0 0.0
    %130 = vmatpush1.msra.mxu0 0.0
    %131 = vmatprep.subr.mxu0 0.0
    %132 = vmatpush1.msra.mxu0 0.0
    %133 = vmatprep.subr.mxu0 0.0
    %134 = vmatpush1.msra.mxu0 0.0
    %135 = vmatprep.subr.mxu0 0.0
    %136 = vmatpush1.msra.mxu0 0.0
    %137 = vmatprep.subr.mxu0 0.0
    %138 = vmatpush1.msra.mxu0 0.0
    %139 = vmatprep.subr.mxu0 0.0
    %140 = vmatpush1.msra.mxu0 0.0
    %141 = vmatprep.subr.mxu0 0.0
    %142 = vmatpush1.msra.mxu0 0.0
    %143 = vmatprep.subr.mxu0 0.0
    %144 = vmatpush1.msra.mxu0 0.0
    %145 = vmatprep.subr.mxu0 0.0
    %146 = vmatpush1.msra.mxu0 %v113
    %147 = vmatprep.subr.mxu0 0.0
    %148 = vmatpush2.msra.mxu0 0.0
    %149 = vmatprep.subr.mxu0 0.0
    %150 = vmatpush2.msra.mxu0 0.0
    %151 = vmatprep.subr.mxu0 0.0
    %152 = vmatpush2.msra.mxu0 0.0
    %153 = vmatprep.subr.mxu0 0.0
    %154 = vmatpush2.msra.mxu0 0.0
    %155 = vmatprep.subr.mxu0 0.0
    %156 = vmatpush2.msra.mxu0 0.0
    %157 = vmatprep.subr.mxu0 0.0
    %158 = vmatpush2.msra.mxu0 0.0
    %159 = vmatprep.subr.mxu0 0.0
    %160 = vmatpush2.msra.mxu0 0.0
    %161 = vmatprep.subr.mxu0 0.0
    %162 = vmatpush2.msra.mxu0 0.0
    %163 = vmatprep.subr.mxu0 0.0
    %164 = vmatpush2.msra.mxu0 0.0
    %165 = vmatprep.subr.mxu0 0.0
    %166 = vmatpush2.msra.mxu0 0.0
    %167 = vmatprep.subr.mxu0 0.0
    %168 = vmatpush2.msra.mxu0 0.0
    %169 = vmatprep.subr.mxu0 0.0
    %170 = vmatpush2.msra.mxu0 0.0
    %171 = vmatprep.subr.mxu0 0.0
    %172 = vmatpush2.msra.mxu0 0.0
    %173 = vmatprep.subr.mxu0 0.0
    %174 = vmatpush2.msra.mxu0 0.0
    %175 = vmatprep.subr.mxu0 0.0
    %176 = vmatpush2.msra.mxu0 0.0
    %177 = vmatprep.subr.mxu0 0.0
    %178 = vmatpush2.msra.mxu0 0.0
    %179 = vmatprep.mubr.f32.mxu0 0.0
    %180 = vmatmul.mubr.f32.gmra.mxu0 %v110
    %v181 = vpop.f32.mrf.mxu0
    %v182 = vadd.f32 0.0, %v181
    %v183 = vpop.f32.mrf.mxu0
    %184 = vdwg.mxu0
    %185 = vadd.xlane.f32.xlu0 %v182
    %v186 = vpop.xlane.xlu0 %185
    %v187 = vmul.f32 %v182, %v182
    %188 = vadd.xlane.f32.xlu0 %v187
    %v189 = vpop.xlane.xlu0 %188
    %v190 = vmul.f32 %v186, 0.0078125
    %v191 = vmul.f32 %v189, 0.0078125
    %v192 = vmul.f32 %v190, %v190
    %v193 = vsub.f32 %v191, %v192
    %v194 = vld [vmem:[%s5] sm:$0xff]
    %v195 = vadd.f32 %v193, 1e-05
    %v196 = vrsqrt.pop %v195
    %v197 = vmul.f32 %v194, %v196
    %v198 = vld [vmem:[%s6] sm:$0xff]
    %v199 = vmul.f32 %v190, %v197
    %v200 = vsub.f32 %v198, %v199
    %202 = vset.pattern.permute.xlu0 0
    %203 = vperm.xlu0 %202, %v197
    %v204 = vpop.permute.xlu0 %203
    %v206 = vmul.f32 %v182, %v204
    %208 = vset.pattern.permute.xlu0 0
    %209 = vperm.xlu0 %208, %v200
    %v210 = vpop.permute.xlu0 %209
    %v212 = vadd.f32 %v206, %v210
    %v213 = vmax.f32 %v212, 0.0
    %214 = vst [vmem:[#allocation2] sm:$0xff] %v213
    // Predicated region
    $region30: #{tpu_custom_call.1} parent=1 // pred_check
      _
    $region31: #{tpu_custom_call.1} parent=1 // pred_check_branch
      %216 = sbr.rel (0) target = $region33
    $region32: #{tpu_custom_call.1} parent=1 // pred_region
      %s218 = ssub.s32 128, 128
      %219 = vsyncadd [#allocation3], %s218
      %s221 = sshll.u32 [#allocation2], 4
      %s222 = int_to_ptr.vmem [resolvable:$true] %s221
      %224 = dma.vmem_to_hbm [thread:$0]  %s222, 128, %s7, [#allocation3]
    $region33: #{tpu_custom_call.1} parent=1 // pred_fallthru
      _
    // Predicated region
    $region34: #{tpu_custom_call.1} parent=1 // pred_check
      _
    $region35: #{tpu_custom_call.1} parent=1 // pred_check_branch
      %226 = sbr.rel (0) target = $region37
    $region36: #{tpu_custom_call.1} parent=1 // pred_region
      %227 = dma.done [#allocation3], 128
    $region37: #{tpu_custom_call.1} parent=1 // pred_fallthru
      _
    %228 = vsyncpa [#allocation3], 1

</llo_original>
